<compile_context>
chip_gen: v7x
topology: tpu7x:2x2x1
jax: 0.10.0
libtpu: 0.0.40
codegen_flags: <defaults>
</compile_context>

<pallas_src>
import functools
import math

import jax
import jax.numpy as jnp
from jax.experimental import pallas as pl
from jax.experimental.pallas import tpu as pltpu


def _round_up(x, m):
    return (x + m - 1) // m * m


def _arcface_kernel(emb_ref, w_ref, inv_e_ref, inv_w_ref, lab_ref, out_ref, *,
                    s, cos_margin, sin_margin, min_cos_theta, m_am):
    # cos_theta for this (TILE_B, TILE_C) tile: MXU matmul (bf16/f32 operands,
    # f32 accumulation) + per-row / per-column inverse-norm scales.
    cos = jnp.dot(emb_ref[...], w_ref[...], preferred_element_type=jnp.float32)
    cos = cos * inv_e_ref[...]            # (TILE_B, 1) broadcast over classes
    cos = cos * inv_w_ref[...]            # (1, TILE_C) broadcast over batch
    cos = jnp.clip(cos, -1.0, 1.0)

    # Margin math, all f32 (sqrt goes to the EUP slot, hidden under MXU/DMA).
    sin = jnp.sqrt(1.0 - cos * cos)
    cos_m = cos * cos_margin - sin * sin_margin
    cos_m = jnp.where(cos > min_cos_theta, cos_m, cos - m_am)

    # One-hot select of the label column, offset by this tile's class base.
    tb, tc = out_ref.shape
    col = jax.lax.broadcasted_iota(jnp.int32, (tb, tc), dimension=1)
    col = col + pl.program_id(0) * tc
    one_hot = col == lab_ref[...]         # lab is (TILE_B, 1) int32

    out_ref[...] = jnp.where(one_hot, cos_m, cos) * s


def arcface_forward(embeddings, weight, label, *, s=64.0, m_arc=0.5, m_am=0.0,
                    tile_b=None, tile_c=None, compute_dtype=jnp.bfloat16):
    """ArcFace forward: embeddings (B, D) f32, weight (D, C), label (B,) int."""
    B, D = embeddings.shape
    Dw, C = weight.shape
    assert D == Dw, "embedding dim mismatch"
    eps = 1e-12

    # --- tiny preliminary pass (pure JAX): inverse L2 norms in f32 ---------
    emb32 = embeddings.astype(jnp.float32)
    w32 = weight.astype(jnp.float32)
    inv_e = 1.0 / jnp.maximum(
        jnp.sqrt(jnp.sum(emb32 * emb32, axis=1, keepdims=True)), eps)   # (B, 1)
    inv_w = 1.0 / jnp.maximum(
        jnp.sqrt(jnp.sum(w32 * w32, axis=0, keepdims=True)), eps)       # (1, C)

    # --- tile selection (fits default scoped VMEM on v5e/v6e/v7x) ----------
    if tile_b is None:
        tile_b = min(256, _round_up(B, 8))
    if tile_c is None:
        tile_c = min(2048, _round_up(C, 128))
    Bp = _round_up(B, tile_b)
    Cp = _round_up(C, tile_c)
    n_c, n_b = Cp // tile_c, Bp // tile_b

    emb_p = jnp.pad(embeddings.astype(compute_dtype), ((0, Bp - B), (0, 0)))
    w_p = jnp.pad(weight.astype(compute_dtype), ((0, 0), (0, Cp - C)))
    inv_e_p = jnp.pad(inv_e, ((0, Bp - B), (0, 0)))
    inv_w_p = jnp.pad(inv_w, ((0, 0), (0, Cp - C)))
    lab_p = jnp.pad(label.astype(jnp.int32).reshape(B, 1),
                    ((0, Bp - B), (0, 0)))

    kernel = functools.partial(
        _arcface_kernel,
        s=float(s),
        cos_margin=math.cos(m_arc),
        sin_margin=math.sin(m_arc),
        min_cos_theta=math.cos(math.pi - m_arc),
        m_am=float(m_am),
    )

    itemsize = jnp.dtype(compute_dtype).itemsize
    cost = pl.CostEstimate(
        flops=2 * Bp * D * Cp,
        transcendentals=Bp * Cp,
        bytes_accessed=(Bp * D + D * Cp) * itemsize + Bp * Cp * 4,
    )

    out = pl.pallas_call(
        kernel,
        out_shape=jax.ShapeDtypeStruct((Bp, Cp), jnp.float32),
        # Grid: class tiles outer, batch tiles innermost -> weight tile reused
        # across consecutive steps (streamed from HBM exactly once).
        grid=(n_c, n_b),
        in_specs=[
            pl.BlockSpec((tile_b, D), lambda c, b: (b, 0)),      # embeddings
            pl.BlockSpec((D, tile_c), lambda c, b: (0, c)),      # weight
            pl.BlockSpec((tile_b, 1), lambda c, b: (b, 0)),      # 1/||emb row||
            pl.BlockSpec((1, tile_c), lambda c, b: (0, c)),      # 1/||W col||
            pl.BlockSpec((tile_b, 1), lambda c, b: (b, 0)),      # labels
        ],
        out_specs=pl.BlockSpec((tile_b, tile_c), lambda c, b: (b, c)),
        compiler_params=pltpu.CompilerParams(
            dimension_semantics=("parallel", "parallel"),
            vmem_limit_bytes=32 * 1024 * 1024,
        ),
        cost_estimate=cost,
    )(emb_p, w_p, inv_e_p, inv_w_p, lab_p)

    return out[:B, :C]


def arcface_reference(embeddings, weight, label, *, s=64.0, m_arc=0.5, m_am=0.0):
    """Pure-f32 JAX mirror of the PyTorch forward (high-precision matmul)."""
    eps = 1e-12
    emb = embeddings / jnp.maximum(
        jnp.linalg.norm(embeddings, axis=1, keepdims=True), eps)
    w = weight / jnp.maximum(
        jnp.linalg.norm(weight, axis=0, keepdims=True), eps)
    cos = jnp.clip(jnp.dot(emb, w, precision=jax.lax.Precision.HIGHEST),
                   -1.0, 1.0)
    sin = jnp.sqrt(1.0 - cos * cos)
    cos_m = cos * math.cos(m_arc) - sin * math.sin(m_arc)
    cos_m = jnp.where(cos > math.cos(math.pi - m_arc), cos_m, cos - m_am)
    one_hot = jax.nn.one_hot(label, cos.shape[1], dtype=jnp.bool_)
    return jnp.where(one_hot, cos_m, cos) * s


def arcface_reference_matched(embeddings, weight, label, *, s=64.0, m_arc=0.5,
                              m_am=0.0, compute_dtype=jnp.bfloat16):
    """Reference mirroring the kernel's dataflow (bf16 MXU operands, f32
    accumulation, post-matmul inverse-norm scaling) for a tight check."""
    eps = 1e-12
    inv_e = 1.0 / jnp.maximum(
        jnp.linalg.norm(embeddings, axis=1, keepdims=True), eps)
    inv_w = 1.0 / jnp.maximum(
        jnp.linalg.norm(weight, axis=0, keepdims=True), eps)
    cos = jnp.dot(embeddings.astype(compute_dtype),
                  weight.astype(compute_dtype),
                  preferred_element_type=jnp.float32) * inv_e * inv_w
    cos = jnp.clip(cos, -1.0, 1.0)
    sin = jnp.sqrt(1.0 - cos * cos)
    cos_m = cos * math.cos(m_arc) - sin * math.sin(m_arc)
    cos_m = jnp.where(cos > math.cos(math.pi - m_arc), cos_m, cos - m_am)
    one_hot = jax.nn.one_hot(label, cos.shape[1], dtype=jnp.bool_)
    return jnp.where(one_hot, cos_m, cos) * s


if __name__ == "__main__":
    # Small shapes that still exercise tiling AND padding:
    #   batch=12      -> padded to 16  (tile_b=8  -> 2 batch tiles)
    #   in_features=64, out_features=300 -> padded to 384 (tile_c=128 -> 3 tiles)
    B, D, C = 12, 64, 300
    TILE_B, TILE_C = 8, 128

    key = jax.random.PRNGKey(0)
    k_emb, k_w, k_lab = jax.random.split(key, 3)

    embeddings = jax.random.normal(k_emb, (B, D), dtype=jnp.float32)

    # Weight init mimicking the module: uniform(-1,1), renorm_(2,1,1e-5),
    # mul_(1e5)  ==  every column ends up with unit L2 norm.
    w_raw = jax.random.uniform(k_w, (D, C), dtype=jnp.float32,
                               minval=-1.0, maxval=1.0)
    col_norm = jnp.maximum(jnp.linalg.norm(w_raw, axis=0, keepdims=True), 1e-12)
    weight = (w_raw / col_norm * 1e-5) * 1e5

    label = jax.random.randint(k_lab, (B,), 0, C, dtype=jnp.int32)

    fwd = jax.jit(functools.partial(arcface_forward, tile_b=TILE_B,
                                    tile_c=TILE_C,
                                    compute_dtype=jnp.bfloat16))
    out = jax.block_until_ready(fwd(embeddings, weight, label))
    assert out.shape == (B, C)

    # Tight check against a reference mirroring the kernel's dataflow
    # (bf16 MXU operands, f32 accumulation, post-matmul norm scales).
    ref_matched = arcface_reference_matched(embeddings, weight, label)
    err_m = float(jnp.max(jnp.abs(out - ref_matched)))
    assert err_m < 1e-2, f"matched-reference max abs err {err_m}"

    # Loose check against the full-f32 PyTorch-mirror reference (difference is
    # purely bf16 operand rounding; outputs are scaled by s=64).
    ref = arcface_reference(embeddings, weight, label)
    err = float(jnp.max(jnp.abs(out - ref)))
    assert err < 1.0, f"f32-reference max abs err {err}"

    print("KERNEL_OK")
</pallas_src>

<mosaic_0001>
module attributes {stable_mosaic.version = 11 : i64} {
  func.func @_arcface_kernel(%arg0: i32, %arg1: i32, %arg2: memref<8x64xbf16, #tpu.memory_space<vmem>>, %arg3: memref<64x128xbf16, #tpu.memory_space<vmem>>, %arg4: memref<8x1xf32, #tpu.memory_space<vmem>>, %arg5: memref<1x128xf32, #tpu.memory_space<vmem>>, %arg6: memref<8x1xi32, #tpu.memory_space<vmem>>, %arg7: memref<8x128xf32, #tpu.memory_space<vmem>>) attributes {dimension_semantics = [#tpu.dimension_semantics<parallel>, #tpu.dimension_semantics<parallel>], iteration_bounds = array<i64: 3, 2>, scalar_prefetch = 0 : i64, scratch_operands = 0 : i64, tpu.core_type = #tpu.core_type<tc>, window_params = [{transform_indices = @transform_0, window_bounds = array<i64: 8, 64>}, {transform_indices = @transform_1, window_bounds = array<i64: 64, 128>}, {transform_indices = @transform_2, window_bounds = array<i64: 8, 1>}, {transform_indices = @transform_3, window_bounds = array<i64: 1, 128>}, {transform_indices = @transform_4, window_bounds = array<i64: 8, 1>}, {transform_indices = @transform_5, window_bounds = array<i64: 8, 128>}]} {
    %c0 = arith.constant 0 : index
    %c0_0 = arith.constant 0 : index
    %0 = vector.load %arg2[%c0, %c0_0] : memref<8x64xbf16, #tpu.memory_space<vmem>>, vector<8x64xbf16>
    %c0_1 = arith.constant 0 : index
    %c0_2 = arith.constant 0 : index
    %1 = vector.load %arg3[%c0_1, %c0_2] : memref<64x128xbf16, #tpu.memory_space<vmem>>, vector<64x128xbf16>
    %cst = arith.constant dense<0.000000e+00> : vector<8x128xf32>
    %2 = tpu.matmul %0, %1, %cst {dimension_numbers = #tpu.dot_dimension_numbers<[1], [0], [0], [1], [0, 0, 1, 1], [], []>} : vector<8x64xbf16>, vector<64x128xbf16>, vector<8x128xf32> -> vector<8x128xf32>
    %c0_3 = arith.constant 0 : index
    %c0_4 = arith.constant 0 : index
    %3 = vector.load %arg4[%c0_3, %c0_4] : memref<8x1xf32, #tpu.memory_space<vmem>>, vector<8x1xf32>
    %4 = vector.broadcast %3 : vector<8x1xf32> to vector<8x128xf32>
    %5 = arith.mulf %2, %4 : vector<8x128xf32>
    %c0_5 = arith.constant 0 : index
    %c0_6 = arith.constant 0 : index
    %6 = vector.load %arg5[%c0_5, %c0_6] : memref<1x128xf32, #tpu.memory_space<vmem>>, vector<1x128xf32>
    %7 = vector.broadcast %6 : vector<1x128xf32> to vector<8x128xf32>
    %8 = arith.mulf %5, %7 : vector<8x128xf32>
    %cst_7 = arith.constant -1.000000e+00 : f32
    %cst_8 = arith.constant 1.000000e+00 : f32
    %9 = vector.broadcast %cst_7 : f32 to vector<8x128xf32>
    %10 = arith.maximumf %9, %8 : vector<8x128xf32>
    %11 = vector.broadcast %cst_8 : f32 to vector<8x128xf32>
    %12 = arith.minimumf %11, %10 : vector<8x128xf32>
    %13 = arith.mulf %12, %12 : vector<8x128xf32>
    %cst_9 = arith.constant 1.000000e+00 : f32
    %14 = vector.broadcast %cst_9 : f32 to vector<8x128xf32>
    %15 = arith.subf %14, %13 : vector<8x128xf32>
    %16 = math.sqrt %15 : vector<8x128xf32>
    %cst_10 = arith.constant 0.87758255 : f32
    %17 = vector.broadcast %cst_10 : f32 to vector<8x128xf32>
    %18 = arith.mulf %12, %17 : vector<8x128xf32>
    %cst_11 = arith.constant 0.47942555 : f32
    %19 = vector.broadcast %cst_11 : f32 to vector<8x128xf32>
    %20 = arith.mulf %16, %19 : vector<8x128xf32>
    %21 = arith.subf %18, %20 : vector<8x128xf32>
    %cst_12 = arith.constant -0.87758255 : f32
    %22 = vector.broadcast %cst_12 : f32 to vector<8x128xf32>
    %23 = arith.cmpf ogt, %12, %22 : vector<8x128xf32>
    %cst_13 = arith.constant 0.000000e+00 : f32
    %24 = vector.broadcast %cst_13 : f32 to vector<8x128xf32>
    %25 = arith.subf %12, %24 : vector<8x128xf32>
    %26 = arith.select %23, %21, %25 : vector<8x128xi1>, vector<8x128xf32>
    %27 = tpu.iota {dimensions = array<i32: 1>} : vector<8x128xi32>
    %c128_i32 = arith.constant 128 : i32
    %28 = arith.muli %arg0, %c128_i32 : i32
    %29 = vector.broadcast %28 : i32 to vector<8x128xi32>
    %30 = arith.addi %27, %29 : vector<8x128xi32>
    %c0_14 = arith.constant 0 : index
    %c0_15 = arith.constant 0 : index
    %31 = vector.load %arg6[%c0_14, %c0_15] : memref<8x1xi32, #tpu.memory_space<vmem>>, vector<8x1xi32>
    %32 = vector.broadcast %31 : vector<8x1xi32> to vector<8x128xi32>
    %33 = arith.cmpi eq, %30, %32 : vector<8x128xi32>
    %34 = arith.select %33, %26, %12 : vector<8x128xi1>, vector<8x128xf32>
    %cst_16 = arith.constant 6.400000e+01 : f32
    %35 = vector.broadcast %cst_16 : f32 to vector<8x128xf32>
    %36 = arith.mulf %34, %35 : vector<8x128xf32>
    %c0_17 = arith.constant 0 : index
    %c0_18 = arith.constant 0 : index
    %37 = vector.load %arg7[%c0_17, %c0_18] : memref<8x128xf32, #tpu.memory_space<vmem>>, vector<8x128xf32>
    tpu.vector_store %arg7[%c0_17, %c0_18], %36 {strides = array<i32>} : memref<8x128xf32, #tpu.memory_space<vmem>>, vector<8x128xf32>,
    return
  }
  func.func @transform_0(%arg0: i32, %arg1: i32) -> (i32, i32) {
    %c0_i32 = arith.constant 0 : i32
    %c0_i32_0 = arith.constant 0 : i32
    return %arg1, %c0_i32 : i32, i32
  }
  func.func @transform_1(%arg0: i32, %arg1: i32) -> (i32, i32) {
    %c0_i32 = arith.constant 0 : i32
    %c0_i32_0 = arith.constant 0 : i32
    return %c0_i32, %arg0 : i32, i32
  }
  func.func @transform_2(%arg0: i32, %arg1: i32) -> (i32, i32) {
    %c0_i32 = arith.constant 0 : i32
    %c0_i32_0 = arith.constant 0 : i32
    return %arg1, %c0_i32 : i32, i32
  }
  func.func @transform_3(%arg0: i32, %arg1: i32) -> (i32, i32) {
    %c0_i32 = arith.constant 0 : i32
    %c0_i32_0 = arith.constant 0 : i32
    return %c0_i32, %arg0 : i32, i32
  }
  func.func @transform_4(%arg0: i32, %arg1: i32) -> (i32, i32) {
    %c0_i32 = arith.constant 0 : i32
    %c0_i32_0 = arith.constant 0 : i32
    return %arg1, %c0_i32 : i32, i32
  }
  func.func @transform_5(%arg0: i32, %arg1: i32) -> (i32, i32) {
    %c0_i32 = arith.constant 0 : i32
    return %arg1, %arg0 : i32, i32
  }
}

</mosaic_0001>

<llo_original>
// kernel: arcface_forward.1
$region0: #{arcface_forward.1}
  #allocation0 [shape = 'u32[]', space=smem, size = 0x4, offset = 0x4, fixed_abs, tag = 'smem constant byte address 0x4 - core index']
  #allocation1 [shape = 'u32[144,128]{1,0:T(1,128)}', space=vmem, size = 0x12000, scoped, tag = 'internal scratch']
  %s0 = inlined_call_operand.vmem [shape: bf16[16,64], index: 0, kind: input, shape index: {}]
  %s1 = inlined_call_operand.vmem [shape: bf16[64,384], index: 1, kind: input, shape index: {}]
  %s2 = inlined_call_operand.vmem [shape: f32[16,1], index: 2, kind: input, shape index: {}]
  %s3 = inlined_call_operand.vmem [shape: f32[1,384], index: 3, kind: input, shape index: {}]
  %s4 = inlined_call_operand.vmem [shape: s32[16,1], index: 4, kind: input, shape index: {}]
  %s5 = inlined_call_operand.hbm [shape: f32[16,384], index: 5, kind: output, shape index: {}]
  %s6 = sld [smem:[#allocation0]]
  $region94: #{arcface_forward.1} parent=0
    _
  %s8 = ssub.s32 1, %s6
  %s9 = scalar_select 0, %s8, %s6
  $region1: #{arcface_forward.1} parent=0
    #allocation2 [shape = 'u8[32768]{0}', space=vmem, size = 0x8000, scoped, tag = 'input window, operand 1']
    #allocation3 [shape = 'u8[8192]{0}', space=vmem, size = 0x2000, scoped, tag = 'output window, operand 0']
    #allocation4 [shape = 's32[2]{0}', space=sflag, size = 0x8, scoped, tag = 'scoped memory for arcface_forward.1']
    %10 = vsyncpa [#allocation4], 0
    %s11 = scalar_lea.sflag [#allocation4], 1
    %12 = vsyncpa %s11, 0
    loop: start=0, step=1, limit=8
    $region2: #{arcface_forward.1} parent=1 // loop_pre_header
      _
    $region3: #{arcface_forward.1} parent=1 // loop_header
      %s14 = sphi 0, %s18
      %p15 = scmp.ge.s32.totalorder %s14, 8
      %s21 = sphi 0, %s33
      %s22 = sphi 0, %s29
      %s23 = sphi 0, %s21
      %s24 = sphi 0, %s22
      %s25 = sphi 0, %s23
      %s26 = sphi 0, %s24
      %s36 = sphi 0, %s38
      %s39 = sphi 0, %s36
      %s40 = sphi 0, %s39
      %s56 = sphi 0, %s40
      %s62 = sphi 0, %s64
      %s65 = sphi 0, %s62
      %s66 = sphi 0, %s65
      %s82 = sphi 0, %s66
      %s88 = sphi 0, %s90
      %s91 = sphi 0, %s88
      %s92 = sphi 0, %s91
      %s108 = sphi 0, %s92
      %s114 = sphi 0, %s116
      %s117 = sphi 0, %s114
      %s118 = sphi 0, %s117
      %s134 = sphi 0, %s118
      %s140 = sphi 0, %s142
      %s143 = sphi 0, %s140
      %s144 = sphi 0, %s143
      %s160 = sphi 0, %s144
      %s168 = sphi 0, %s170
      %s171 = sphi 0, %s168
      %s172 = sphi 0, %s171
      %s188 = sphi 0, %s172
    $region4: #{arcface_forward.1} parent=1 // loop_header_branch
      %17 = sbr.rel (%p15) target = $region8
    $region5: #{arcface_forward.1} parent=1 // loop_body
      %s19 = ssub.s32 %s14, 1
      %s20 = ssub.s32 %s14, 2
      %s27 = sadd.s32 1, %s22
      %p28 = scmp.ge.s32.totalorder %s27, 2
      %s29 = scalar_select %p28, 0, %s27
      %s30 = sadd.s32 1, %s21
      %s31 = scalar_select %p28, %s30, %s21
      %p32 = scmp.ge.s32.totalorder %s31, 3
      %s33 = scalar_select %p32, 0, %s31
      %s34 = ssub.s32 %s22, %s29
      %p35 = scmp.eq.s32.totalorder %s34, 0
      %s37 = sadd.s32 %s36, 1
      %s38 = scalar_select %p35, %s36, %s37
      %p41 = pneg %p35
      %p42 = scmp.eq.s32.totalorder %s14, 5
      %p43 = por %p41, %p42
      %p44 = scmp.ne.s32.totalorder %s36, %s39
      %p45 = scmp.eq.s32.totalorder %s14, 0
      %p46 = por %p44, %p45
      %p47 = scmp.ne.s32.totalorder %s36, %s39
      %p48 = scmp.eq.s32.totalorder %s19, 5
      %p49 = por %p47, %p48
      %p50 = scmp.ne.s32.totalorder %s39, %s40
      %p51 = scmp.eq.s32.totalorder %s19, 0
      %p52 = por %p50, %p51
      %p53 = scmp.ne.s32.totalorder %s39, %s40
      %p54 = scmp.eq.s32.totalorder %s20, 5
      %p55 = por %p53, %p54
      %p57 = scmp.ne.s32.totalorder %s40, %s56
      %p58 = scmp.eq.s32.totalorder %s20, 0
      %p59 = por %p57, %p58
      %s60 = ssub.s32 %s21, %s33
      %p61 = scmp.eq.s32.totalorder %s60, 0
      %s63 = sadd.s32 %s62, 1
      %s64 = scalar_select %p61, %s62, %s63
      %p67 = pneg %p61
      %p68 = scmp.eq.s32.totalorder %s14, 5
      %p69 = por %p67, %p68
      %p70 = scmp.ne.s32.totalorder %s62, %s65
      %p71 = scmp.eq.s32.totalorder %s14, 0
      %p72 = por %p70, %p71
      %p73 = scmp.ne.s32.totalorder %s62, %s65
      %p74 = scmp.eq.s32.totalorder %s19, 5
      %p75 = por %p73, %p74
      %p76 = scmp.ne.s32.totalorder %s65, %s66
      %p77 = scmp.eq.s32.totalorder %s19, 0
      %p78 = por %p76, %p77
      %p79 = scmp.ne.s32.totalorder %s65, %s66
      %p80 = scmp.eq.s32.totalorder %s20, 5
      %p81 = por %p79, %p80
      %p83 = scmp.ne.s32.totalorder %s66, %s82
      %p84 = scmp.eq.s32.totalorder %s20, 0
      %p85 = por %p83, %p84
      %s86 = ssub.s32 %s22, %s29
      %p87 = scmp.eq.s32.totalorder %s86, 0
      %s89 = sadd.s32 %s88, 1
      %s90 = scalar_select %p87, %s88, %s89
      %p93 = pneg %p87
      %p94 = scmp.eq.s32.totalorder %s14, 5
      %p95 = por %p93, %p94
      %p96 = scmp.ne.s32.totalorder %s88, %s91
      %p97 = scmp.eq.s32.totalorder %s14, 0
      %p98 = por %p96, %p97
      %p99 = scmp.ne.s32.totalorder %s88, %s91
      %p100 = scmp.eq.s32.totalorder %s19, 5
      %p101 = por %p99, %p100
      %p102 = scmp.ne.s32.totalorder %s91, %s92
      %p103 = scmp.eq.s32.totalorder %s19, 0
      %p104 = por %p102, %p103
      %p105 = scmp.ne.s32.totalorder %s91, %s92
      %p106 = scmp.eq.s32.totalorder %s20, 5
      %p107 = por %p105, %p106
      %p109 = scmp.ne.s32.totalorder %s92, %s108
      %p110 = scmp.eq.s32.totalorder %s20, 0
      %p111 = por %p109, %p110
      %s112 = ssub.s32 %s21, %s33
      %p113 = scmp.eq.s32.totalorder %s112, 0
      %s115 = sadd.s32 %s114, 1
      %s116 = scalar_select %p113, %s114, %s115
      %p119 = pneg %p113
      %p120 = scmp.eq.s32.totalorder %s14, 5
      %p121 = por %p119, %p120
      %p122 = scmp.ne.s32.totalorder %s114, %s117
      %p123 = scmp.eq.s32.totalorder %s14, 0
      %p124 = por %p122, %p123
      %p125 = scmp.ne.s32.totalorder %s114, %s117
      %p126 = scmp.eq.s32.totalorder %s19, 5
      %p127 = por %p125, %p126
      %p128 = scmp.ne.s32.totalorder %s117, %s118
      %p129 = scmp.eq.s32.totalorder %s19, 0
      %p130 = por %p128, %p129
      %p131 = scmp.ne.s32.totalorder %s117, %s118
      %p132 = scmp.eq.s32.totalorder %s20, 5
      %p133 = por %p131, %p132
      %p135 = scmp.ne.s32.totalorder %s118, %s134
      %p136 = scmp.eq.s32.totalorder %s20, 0
      %p137 = por %p135, %p136
      %s138 = ssub.s32 %s22, %s29
      %p139 = scmp.eq.s32.totalorder %s138, 0
      %s141 = sadd.s32 %s140, 1
      %s142 = scalar_select %p139, %s140, %s141
      %p145 = pneg %p139
      %p146 = scmp.eq.s32.totalorder %s14, 5
      %p147 = por %p145, %p146
      %p148 = scmp.ne.s32.totalorder %s140, %s143
      %p149 = scmp.eq.s32.totalorder %s14, 0
      %p150 = por %p148, %p149
      %p151 = scmp.ne.s32.totalorder %s140, %s143
      %p152 = scmp.eq.s32.totalorder %s19, 5
      %p153 = por %p151, %p152
      %p154 = scmp.ne.s32.totalorder %s143, %s144
      %p155 = scmp.eq.s32.totalorder %s19, 0
      %p156 = por %p154, %p155
      %p157 = scmp.ne.s32.totalorder %s143, %s144
      %p158 = scmp.eq.s32.totalorder %s20, 5
      %p159 = por %p157, %p158
      %p161 = scmp.ne.s32.totalorder %s144, %s160
      %p162 = scmp.eq.s32.totalorder %s20, 0
      %p163 = por %p161, %p162
      %s164 = ssub.s32 %s22, %s29
      %s165 = ssub.s32 %s21, %s33
      %s166 = sor.u32 %s164, %s165
      %p167 = scmp.eq.s32.totalorder %s166, 0
      %s169 = sadd.s32 %s168, 1
      %s170 = scalar_select %p167, %s168, %s169
      %p173 = pneg %p167
      %p174 = scmp.eq.s32.totalorder %s14, 5
      %p175 = por %p173, %p174
      %p176 = scmp.ne.s32.totalorder %s168, %s171
      %p177 = scmp.eq.s32.totalorder %s14, 0
      %p178 = por %p176, %p177
      %p179 = scmp.ne.s32.totalorder %s168, %s171
      %p180 = scmp.eq.s32.totalorder %s19, 5
      %p181 = por %p179, %p180
      %p182 = scmp.ne.s32.totalorder %s171, %s172
      %p183 = scmp.eq.s32.totalorder %s19, 0
      %p184 = por %p182, %p183
      %p185 = scmp.ne.s32.totalorder %s171, %s172
      %p186 = scmp.eq.s32.totalorder %s20, 5
      %p187 = por %p185, %p186
      %p189 = scmp.ne.s32.totalorder %s172, %s188
      %p190 = scmp.eq.s32.totalorder %s20, 0
      %p191 = por %p189, %p190
      %p192 = scmp.le.s32.totalorder 1, %s14
      %p193 = scmp.lt.s32.totalorder %s14, 7
      %p194 = pnand %p192, %p193
      %p195 = pneg %p194
      // Predicated region
      $region9: #{arcface_forward.1} parent=5 // pred_check
        _
      $region10: #{arcface_forward.1} parent=5 // pred_check_branch
        %197 = sbr.rel (%p194) target = $region12
      $region11: #{arcface_forward.1} parent=5 // pred_region
        %s198 = ssub.s32 %s14, 1
      $region12: #{arcface_forward.1} parent=5 // pred_fallthru
        _
      %p199 = scmp.lt.s32.totalorder %s14, 6
      // Predicated region
      $region13: #{arcface_forward.1} parent=5 // pred_check
        %p200 = pneg %p199
      $region14: #{arcface_forward.1} parent=5 // pred_check_branch
        %202 = sbr.rel (%p200) target = $region16
      $region15: #{arcface_forward.1} parent=5 // pred_region
        // Predicated region
        $region17: #{arcface_forward.1} parent=15 // pred_check
          %p203 = pneg %p46
        $region18: #{arcface_forward.1} parent=15 // pred_check_branch
          %205 = sbr.rel (%p203) target = $region20
        $region19: #{arcface_forward.1} parent=15 // pred_region
          %p206 = scmp.lt.s32.totalorder %s22, 1
          %s207 = scalar_select %p206, %s22, 1
          %s208 = smul.addr %s207, 4
          %s209 = scalar_lea.vmem %s0, %s208
        $region20: #{arcface_forward.1} parent=15 // pred_fallthru
          _
        // Predicated region
        $region21: #{arcface_forward.1} parent=15 // pred_check
          %p210 = pneg %p72
        $region22: #{arcface_forward.1} parent=15 // pred_check_branch
          %212 = sbr.rel (%p210) target = $region24
        $region23: #{arcface_forward.1} parent=15 // pred_region
          %s213 = sand.u32 %s62, 1
          %s214 = sand.u32 %s62, 1
          %s215 = smul.addr %s214, 32
          %s216 = scalar_lea.vmem [#allocation2], %s215
          %s217 = smul.addr %s21, 4
          %s218 = scalar_lea.vmem %s1, %s217
          // Predicated region
          $region25: #{arcface_forward.1} parent=23 // pred_check
            _
          $region26: #{arcface_forward.1} parent=23 // pred_check_branch
            %220 = sbr.rel (0) target = $region28
          $region27: #{arcface_forward.1} parent=23 // pred_region
            // Predicated region
            $region29: #{arcface_forward.1} parent=27 // pred_check
              _
            $region30: #{arcface_forward.1} parent=27 // pred_check_branch
              %222 = sbr.rel target = $region32
            $region31: #{arcface_forward.1} parent=27 // pred_region
              // Predicated region
              $region44: #{arcface_forward.1} parent=31 // pred_check
                _
              $region45: #{arcface_forward.1} parent=31 // pred_check_branch
                %251 = sbr.rel (0) target = $region47
              $region46: #{arcface_forward.1} parent=31 // pred_region
                loop: start=0, step=1, limit=1
                $region48: #{arcface_forward.1} parent=46 // loop_pre_header
                  _
                $region49: #{arcface_forward.1} parent=46 // loop_header
                  %s253 = sphi 0, %s257
                  %p254 = scmp.ge.s32.totalorder %s253, 1
                  %s258 = sphi %s218, %s218
                  %s259 = sphi %s216, %s216
                $region50: #{arcface_forward.1} parent=46 // loop_header_branch
                  %256 = sbr.rel (%p254) target = $region54
                $region51: #{arcface_forward.1} parent=46 // loop_body
                  _
                $region52: #{arcface_forward.1} parent=46 // loop_footer
                  %s257 = sadd.s32 1, %s253
                $region53: #{arcface_forward.1} parent=46 // loop_footer_branch
                  %252 = sbr.rel target = $region49
                $region54: #{arcface_forward.1} parent=46 // loop_exit
                  _
                loop: start=0, step=1, limit=1
                $region55: #{arcface_forward.1} parent=46 // loop_pre_header
                  _
                $region56: #{arcface_forward.1} parent=46 // loop_header
                  %s262 = sphi 0, %s266
                  %p263 = scmp.ge.s32.totalorder %s262, 1
                  %s267 = sphi %s218, %s218
                  %s268 = sphi %s216, %s216
                $region57: #{arcface_forward.1} parent=46 // loop_header_branch
                  %265 = sbr.rel (%p263) target = $region61
                $region58: #{arcface_forward.1} parent=46 // loop_body
                  %v269 = vld [vmem:[%s267] sm:$0xf]
                  %270 = vst [vmem:[%s268] sm:$0xf] %v269
                  %v271 = vld [vmem:[%s267 + $0xc] sm:$0xf]
                  %272 = vst [vmem:[%s268 + $0x4] sm:$0xf] %v271
                  %v273 = vld [vmem:[%s267 + $0x18] sm:$0xf]
                  %274 = vst [vmem:[%s268 + $0x8] sm:$0xf] %v273
                  %v275 = vld [vmem:[%s267 + $0x24] sm:$0xf]
                  %276 = vst [vmem:[%s268 + $0xc] sm:$0xf] %v275
                  %v277 = vld [vmem:[%s267 + $0x30] sm:$0xf]
                  %278 = vst [vmem:[%s268 + $0x10] sm:$0xf] %v277
                  %v279 = vld [vmem:[%s267 + $0x3c] sm:$0xf]
                  %280 = vst [vmem:[%s268 + $0x14] sm:$0xf] %v279
                  %v281 = vld [vmem:[%s267 + $0x48] sm:$0xf]
                  %282 = vst [vmem:[%s268 + $0x18] sm:$0xf] %v281
                  %v283 = vld [vmem:[%s267 + $0x54] sm:$0xf]
                  %284 = vst [vmem:[%s268 + $0x1c] sm:$0xf] %v283
                $region59: #{arcface_forward.1} parent=46 // loop_footer
                  %s266 = sadd.s32 1, %s262
                $region60: #{arcface_forward.1} parent=46 // loop_footer_branch
                  %261 = sbr.rel target = $region56
                $region61: #{arcface_forward.1} parent=46 // loop_exit
                  _
              $region47: #{arcface_forward.1} parent=31 // pred_fallthru
                _
            $region32: #{arcface_forward.1} parent=27 // pred_fallthru
              _
            // Predicated region
            $region33: #{arcface_forward.1} parent=27 // pred_check
              _
            $region34: #{arcface_forward.1} parent=27 // pred_check_branch
              %224 = sbr.rel (0) target = $region36
            $region35: #{arcface_forward.1} parent=27 // pred_region
              loop: start=0, step=1, limit=1
              $region37: #{arcface_forward.1} parent=35 // loop_pre_header
                _
              $region38: #{arcface_forward.1} parent=35 // loop_header
                %s227 = sphi 0, %s231
                %p228 = scmp.ge.s32.totalorder %s227, 1
                %s232 = sphi %s218, %s218
                %s233 = sphi %s216, %s216
              $region39: #{arcface_forward.1} parent=35 // loop_header_branch
                %230 = sbr.rel (%p228) target = $region43
              $region40: #{arcface_forward.1} parent=35 // loop_body
                %v234 = vld [vmem:[%s232] sm:$0xf]
                %235 = vst [vmem:[%s233] sm:$0xf] %v234
                %v236 = vld [vmem:[%s232 + $0xc] sm:$0xf]
                %237 = vst [vmem:[%s233 + $0x4] sm:$0xf] %v236
                %v238 = vld [vmem:[%s232 + $0x18] sm:$0xf]
                %239 = vst [vmem:[%s233 + $0x8] sm:$0xf] %v238
                %v240 = vld [vmem:[%s232 + $0x24] sm:$0xf]
                %241 = vst [vmem:[%s233 + $0xc] sm:$0xf] %v240
                %v242 = vld [vmem:[%s232 + $0x30] sm:$0xf]
                %243 = vst [vmem:[%s233 + $0x10] sm:$0xf] %v242
                %v244 = vld [vmem:[%s232 + $0x3c] sm:$0xf]
                %245 = vst [vmem:[%s233 + $0x14] sm:$0xf] %v244
                %v246 = vld [vmem:[%s232 + $0x48] sm:$0xf]
                %247 = vst [vmem:[%s233 + $0x18] sm:$0xf] %v246
                %v248 = vld [vmem:[%s232 + $0x54] sm:$0xf]
                %249 = vst [vmem:[%s233 + $0x1c] sm:$0xf] %v248
              $region41: #{arcface_forward.1} parent=35 // loop_footer
                %s231 = sadd.s32 1, %s227
              $region42: #{arcface_forward.1} parent=35 // loop_footer_branch
                %226 = sbr.rel target = $region38
              $region43: #{arcface_forward.1} parent=35 // loop_exit
                _
            $region36: #{arcface_forward.1} parent=27 // pred_fallthru
              _
          $region28: #{arcface_forward.1} parent=23 // pred_fallthru
            _
          %285 = vnop
        $region24: #{arcface_forward.1} parent=15 // pred_fallthru
          _
        // Predicated region
        $region62: #{arcface_forward.1} parent=15 // pred_check
          %p286 = pneg %p98
        $region63: #{arcface_forward.1} parent=15 // pred_check_branch
          %288 = sbr.rel (%p286) target = $region65
        $region64: #{arcface_forward.1} parent=15 // pred_region
          %p289 = scmp.lt.s32.totalorder %s22, 1
          %s290 = scalar_select %p289, %s22, 1
          %s291 = smul.addr %s290, 8
          %s292 = scalar_lea.vmem %s2, %s291
        $region65: #{arcface_forward.1} parent=15 // pred_fallthru
          _
        // Predicated region
        $region66: #{arcface_forward.1} parent=15 // pred_check
          %p293 = pneg %p124
        $region67: #{arcface_forward.1} parent=15 // pred_check_branch
          %295 = sbr.rel (%p293) target = $region69
        $region68: #{arcface_forward.1} parent=15 // pred_region
          %p296 = scmp.lt.s32.totalorder %s21, 2
          %s297 = scalar_select %p296, %s21, 2
          %s298 = scalar_lea.vmem %s3, %s297
        $region69: #{arcface_forward.1} parent=15 // pred_fallthru
          _
        // Predicated region
        $region70: #{arcface_forward.1} parent=15 // pred_check
          %p299 = pneg %p150
        $region71: #{arcface_forward.1} parent=15 // pred_check_branch
          %301 = sbr.rel (%p299) target = $region73
        $region72: #{arcface_forward.1} parent=15 // pred_region
          %p302 = scmp.lt.s32.totalorder %s22, 1
          %s303 = scalar_select %p302, %s22, 1
          %s304 = smul.addr %s303, 8
          %s305 = scalar_lea.vmem %s4, %s304
        $region73: #{arcface_forward.1} parent=15 // pred_fallthru
          _
      $region16: #{arcface_forward.1} parent=5 // pred_fallthru
        _
      %p306 = scmp.le.s32.totalorder 1, %s14
      %p307 = scmp.lt.s32.totalorder %s14, 7
      %p308 = pnand %p306, %p307
      %p309 = pneg %p308
      // Predicated region
      $region74: #{arcface_forward.1} parent=5 // pred_check
        _
      $region75: #{arcface_forward.1} parent=5 // pred_check_branch
        %311 = sbr.rel (%p308) target = $region77
      $region76: #{arcface_forward.1} parent=5 // pred_region
        %s312 = ssub.s32 %s14, 1
        %s313 = sand.u32 %s65, 1
        %s314 = sand.u32 %s65, 1
        %s315 = smul.addr %s314, 32
        %s316 = scalar_lea.vmem [#allocation2], %s315
        // Predicated region
        $region78: #{arcface_forward.1} parent=76 // pred_check
          %p317 = pneg %p78
        $region79: #{arcface_forward.1} parent=76 // pred_check_branch
          %319 = sbr.rel (%p317) target = $region81
        $region80: #{arcface_forward.1} parent=76 // pred_region
          _
        $region81: #{arcface_forward.1} parent=76 // pred_fallthru
          _
        %p320 = scmp.lt.s32.totalorder %s24, 1
        %s321 = scalar_select %p320, %s24, 1
        %s322 = smul.addr %s321, 4
        %s323 = scalar_lea.vmem %s0, %s322
        %p324 = pneg %p52
        %p325 = pneg %p49
        %s326 = sand.u32 %s65, 1
        %s327 = sand.u32 %s65, 1
        %s328 = smul.addr %s327, 32
        %s329 = scalar_lea.vmem [#allocation2], %s328
        %p330 = pneg %p78
        %p331 = pneg %p75
        %p332 = scmp.lt.s32.totalorder %s24, 1
        %s333 = scalar_select %p332, %s24, 1
        %s334 = smul.addr %s333, 8
        %s335 = scalar_lea.vmem %s2, %s334
        %p336 = pneg %p104
        %p337 = pneg %p101
        %p338 = scmp.lt.s32.totalorder %s23, 2
        %s339 = scalar_select %p338, %s23, 2
        %s340 = scalar_lea.vmem %s3, %s339
        %p341 = pneg %p130
        %p342 = pneg %p127
        %p343 = scmp.lt.s32.totalorder %s24, 1
        %s344 = scalar_select %p343, %s24, 1
        %s345 = smul.addr %s344, 8
        %s346 = scalar_lea.vmem %s4, %s345
        %p347 = pneg %p156
        %p348 = pneg %p153
        %p349 = pneg %p184
        %p350 = pneg %p181
        %s351 = sand.u32 %s171, 1
        %s352 = scalar_lea.sflag [#allocation4], %s351
        %s353 = sand.u32 %s171, 1
        %s354 = smul.addr %s353, 8
        %s355 = scalar_lea.vmem [#allocation3], %s354
        %p356 = scmp.lt.s32.totalorder %s24, 1
        %s357 = scalar_select %p356, %s24, 1
        %s358 = smul.addr %s357, 4
        %s359 = scalar_lea.vmem %s0, %s358
        %p360 = scmp.lt.s32.totalorder %s24, 1
        %s361 = scalar_select %p360, %s24, 1
        %s362 = smul.addr %s361, 8
        %s363 = scalar_lea.vmem %s2, %s362
        %p364 = scmp.lt.s32.totalorder %s23, 2
        %s365 = scalar_select %p364, %s23, 2
        %s366 = scalar_lea.vmem %s3, %s365
        %p367 = scmp.lt.s32.totalorder %s24, 1
        %s368 = scalar_select %p367, %s24, 1
        %s369 = smul.addr %s368, 8
        %s370 = scalar_lea.vmem %s4, %s369
        %v372 = vld [vmem:[%s359] sm:$0xf]
        %v373 = vld [vmem:[%s316] sm:$0xf]
        %v374 = vld [vmem:[%s316 + $0x4] sm:$0xf]
        %v375 = vld [vmem:[%s316 + $0x8] sm:$0xf]
        %v376 = vld [vmem:[%s316 + $0xc] sm:$0xf]
        %v377 = vld [vmem:[%s316 + $0x10] sm:$0xf]
        %v378 = vld [vmem:[%s316 + $0x14] sm:$0xf]
        %v379 = vld [vmem:[%s316 + $0x18] sm:$0xf]
        %v380 = vld [vmem:[%s316 + $0x1c] sm:$0xf]
        %v389 = vunpack.c.l.b16 %v373
        %v390 = vunpack.c.l.b16 %v374
        %v391 = vunpack.c.l.b16 %v375
        %v392 = vunpack.c.l.b16 %v376
        %v393 = vunpack.c.l.b16 %v377
        %v394 = vunpack.c.l.b16 %v378
        %v395 = vunpack.c.l.b16 %v379
        %v396 = vunpack.c.l.b16 %v380
        %v397 = vpack.c.b16 %v390, %v389
        %v398 = vpack.c.b16 %v392, %v391
        %v399 = vpack.c.b16 %v394, %v393
        %v400 = vpack.c.b16 %v396, %v395
        %vm405 = vcmask 523264
        %v407 = vsel %vm405, %v372, 0
        %409 = vmatprep.subr.bf16.mxu0 0
        %410 = vmatpush1.bf16.msra.mxu0 %v397
        %411 = vmatprep.subr.bf16.mxu0 0
        %412 = vmatpush1.bf16.msra.mxu0 %v398
        %413 = vmatprep.subr.bf16.mxu0 0
        %414 = vmatpush1.bf16.msra.mxu0 %v399
        %415 = vmatprep.subr.bf16.mxu0 0
        %416 = vmatpush1.bf16.msra.mxu0 %v400
        %417 = vmatprep.subr.bf16.mxu0 0
        %418 = vmatpush1.bf16.msra.mxu0 0
        %419 = vmatprep.subr.bf16.mxu0 0
        %420 = vmatpush1.bf16.msra.mxu0 0
        %421 = vmatprep.subr.bf16.mxu0 0
        %422 = vmatpush1.bf16.msra.mxu0 0
        %423 = vmatprep.subr.bf16.mxu0 0
        %424 = vmatpush1.bf16.msra.mxu0 0
        %425 = vmatprep.subr.bf16.mxu0 0
        %426 = vmatpush1.bf16.msra.mxu0 0
        %427 = vmatprep.subr.bf16.mxu0 0
        %428 = vmatpush1.bf16.msra.mxu0 0
        %429 = vmatprep.subr.bf16.mxu0 0
        %430 = vmatpush1.bf16.msra.mxu0 0
        %431 = vmatprep.subr.bf16.mxu0 0
        %432 = vmatpush1.bf16.msra.mxu0 0
        %433 = vmatprep.subr.bf16.mxu0 0
        %434 = vmatpush1.bf16.msra.mxu0 0
        %435 = vmatprep.subr.bf16.mxu0 0
        %436 = vmatpush1.bf16.msra.mxu0 0
        %437 = vmatprep.subr.bf16.mxu0 0
        %438 = vmatpush1.bf16.msra.mxu0 0
        %439 = vmatprep.subr.bf16.mxu0 0
        %440 = vmatpush1.bf16.msra.mxu0 0
        %441 = vmatprep.mubr.bf16.mxu0 0
        %442 = vmatmul.mubr.bf16.gmra.mrb[0].mxu0 %v407
        %v443 = vpop.f32.mrb[0].mxu0
        %v444 = vadd.f32 0.0, %v443
        %v445 = vpop.f32.mrb[0].mxu0
        %v446 = vpop.f32.mrb[0].mxu0
        %v447 = vpop.f32.mrb[0].mxu0
        %448 = vdwg.mxu0
        %v449 = vld [vmem:[%s363] sm:$0xff]
        %451 = vset.pattern.permute.xlu0 0
        %452 = vperm.xlu0 %451, %v449
        %v453 = vpop.permute.xlu0 %452
        %v455 = vmul.f32 %v444, %v453
        %v456 = vld [vmem:[%s366] sm:$0x1]
        %v458 = vlaneseq
        %v459 = vshrl.u32 %v458, 7
        %v460 = vsub.s32 0, %v459
        %v461 = vrot.slane %v456, %v460
        %v463 = vmul.f32 %v455, %v461
        %v464 = vmax.f32 %v463, -1.0
        %v465 = vmin.f32 %v464, 1.0
        %v466 = vmul.f32 %v465, %v465
        %v467 = vsub.f32 1.0, %v466
        %v468 = vrsqrt.pop %v467
        %v469 = vmul.f32 %v467, %v468
        %vm470 = vcmp.eq.f32.partialorder %v467, inf
        %v471 = vsel %vm470, %v467, %v469
        %vm472 = vcmp.eq.f32.partialorder %v467, 0.0
        %v473 = vand.u32 %v467, 2147483648
        %v474 = vsel %vm472, %v473, %v471
        %v475 = vmul.f32 %v465, 0.87758255
        %v476 = vmul.f32 %v474, 0.47942555
        %v477 = vsub.f32 %v475, %v476
        %vm478 = vcmp.gt.f32.partialorder %v465, -0.87758255
        %v479 = vsel %vm478, %v477, %v465
        %v480 = vlaneseq
        %v481 = vand.u32 %v480, 127
        %s482 = smul.u32 %s23, 128
        %v483 = vstv %s482
        %v484 = vadd.s32 %v481, %v483
        %v485 = vld [vmem:[%s370] sm:$0xff]
        %486 = vset.pattern.permute.xlu0 0
        %487 = vperm.xlu0 %486, %v485
        %v488 = vpop.permute.xlu0 %487
        %vm489 = vcmp.eq.s32.totalorder %v484, %v488
        %v490 = vsel %vm489, %v479, %v465
        %v491 = vmul.f32 %v490, 64.0
        %492 = vst [vmem:[%s355] sm:$0xff] %v491
        %s493 = sand.u32 %s171, 1
        %s494 = scalar_lea.sflag [#allocation4], %s493
        %s495 = sand.u32 %s171, 1
        %s496 = smul.addr %s495, 8
        %s497 = scalar_lea.vmem [#allocation3], %s496
        // Predicated region
        $region82: #{arcface_forward.1} parent=76 // pred_check
          %p498 = pneg %p181
        $region83: #{arcface_forward.1} parent=76 // pred_check_branch
          %500 = sbr.rel (%p498) target = $region85
        $region84: #{arcface_forward.1} parent=76 // pred_region
          %s502 = ssub.s32 128, 128
          %503 = vsyncadd %s494, %s502
          %s504 = smul.addr %s24, 3
          %s505 = sadd.s32 %s23, %s504
          %s506 = smul.addr %s505, 128
          %s507 = scalar_lea.hbm %s5, %s506
          %s509 = sshll.u32 %s497, 4
          %s510 = int_to_ptr.vmem [resolvable:$true] %s509
          %512 = dma.vmem_to_hbm [thread:$0]  %s510, 128, %s507, %s494
        $region85: #{arcface_forward.1} parent=76 // pred_fallthru
          _
      $region77: #{arcface_forward.1} parent=5 // pred_fallthru
        _
      %p513 = scmp.le.s32.totalorder 2, %s14
      // Predicated region
      $region86: #{arcface_forward.1} parent=5 // pred_check
        %p514 = pneg %p513
      $region87: #{arcface_forward.1} parent=5 // pred_check_branch
        %516 = sbr.rel (%p514) target = $region89
      $region88: #{arcface_forward.1} parent=5 // pred_region
        %s517 = ssub.s32 %s14, 2
        // Predicated region
        $region90: #{arcface_forward.1} parent=88 // pred_check
          %p518 = pneg %p187
        $region91: #{arcface_forward.1} parent=88 // pred_check_branch
          %520 = sbr.rel (%p518) target = $region93
        $region92: #{arcface_forward.1} parent=88 // pred_region
          %s521 = sand.u32 %s172, 1
          %s522 = scalar_lea.sflag [#allocation4], %s521
          %s523 = sand.u32 %s172, 1
          %s524 = smul.addr %s523, 8
          %s525 = scalar_lea.vmem [#allocation3], %s524
          %526 = dma.done %s522, 128
        $region93: #{arcface_forward.1} parent=88 // pred_fallthru
          _
      $region89: #{arcface_forward.1} parent=5 // pred_fallthru
        _
    $region6: #{arcface_forward.1} parent=1 // loop_footer
      %s18 = sadd.s32 1, %s14
    $region7: #{arcface_forward.1} parent=1 // loop_footer_branch
      %13 = sbr.rel target = $region3
    $region8: #{arcface_forward.1} parent=1 // loop_exit
      _
    %527 = vsyncpa [#allocation4], 1
    %s528 = scalar_lea.sflag [#allocation4], 1
    %529 = vsyncpa %s528, 1

</llo_original>
